<compile_context>
chip_gen: v5e
topology: v5e:2x2
jax: 0.10.0
libtpu: 0.0.40
codegen_flags: <defaults>
</compile_context>

<pallas_src>
import functools

import jax
import jax.numpy as jnp
from jax.experimental import pallas as pl
from jax.experimental.pallas import tpu as pltpu


def _time_mask_kernel(x_ref, start_ref, o_ref, *, mask_len: int, seq_len: int):
    # x_ref:     (block_r, block_l) tile of the flattened (N*C, L) signal
    # x starts:  (block_r, 1) int32 mask start per row, guaranteed in [0, L)
    # o_ref:     (block_r, block_l)
    block_l = x_ref.shape[1]
    lane_off = pl.program_id(1) * block_l
    # (1, block_l) iota broadcast against (block_r, 1) starts (perf review:
    # don't materialize a full (block_r, block_l) int32 iota).
    pos = lane_off + jax.lax.broadcasted_iota(jnp.int32, (1, block_l), 1)
    # Circular distance from the mask start without an integer modulo: both
    # start and in-range pos lie in [0, L), so one conditional add suffices.
    # Padded lanes/rows of edge tiles may compute garbage, but Pallas discards
    # their writeback.
    d = pos - start_ref[...]
    d = jnp.where(d < 0, d + seq_len, d)
    keep = d >= mask_len
    o_ref[...] = jnp.where(keep, x_ref[...], jnp.zeros_like(x_ref[...]))


def _round_up(x: int, m: int) -> int:
    return ((x + m - 1) // m) * m


def _plan_tiles(R: int, L: int, itemsize: int, *, target_block_bytes: int):
    """Lane-major tile plan with a pl.cdiv grid (no full-dim fallback)."""
    sub_unit = {4: 8, 2: 16, 1: 32}.get(itemsize, 8)
    row_bytes = L * itemsize

    # Prefer full-L lane blocks (long contiguous HBM bursts, effectively 1-D
    # grid); otherwise the largest 128-lane multiple within the byte budget.
    if row_bytes <= target_block_bytes or L <= 128:
        block_l = L
    else:
        block_l = max(128, (target_block_bytes // itemsize) // 128 * 128)
        block_l = min(block_l, (L // 128) * 128)

    block_r = max(sub_unit, target_block_bytes // max(block_l * itemsize, 1))
    block_r = min(_round_up(block_r, sub_unit), _round_up(R, sub_unit))
    if block_r >= R:
        block_r = R  # full dimension: always a legal block shape

    # Keep >= 2 grid steps when possible so both v7x TensorCores get work.
    if pl.cdiv(R, block_r) * pl.cdiv(L, block_l) < 2 and R > sub_unit:
        block_r = _round_up(pl.cdiv(R, 2), sub_unit)

    return block_r, block_l


def random_time_mask(
    x: jax.Array,
    starts: jax.Array,
    p: float,
    *,
    target_block_bytes: int = 2 << 20,
) -> jax.Array:
    """x: (N, C, L) float; starts: (N, C) integer mask-start per (n, c)."""
    if p < 0.0 or p > 1.0:
        raise ValueError(f"p not within [0, 1]: saw {p}")
    N, C, L = x.shape
    mask_len = int(L * p)  # trace-time constant, matches torch's int(L * p)
    if mask_len == 0:      # p ~= 0: the torch module is a no-op as well
        return x
    R = N * C
    itemsize = jnp.dtype(x.dtype).itemsize

    x_flat = x.reshape(R, L)
    # Enforce the [0, L) precondition of the in-kernel compare+select.
    starts2 = jnp.mod(starts.astype(jnp.int32), L).reshape(R, 1)

    block_r, block_l = _plan_tiles(R, L, itemsize,
                                   target_block_bytes=target_block_bytes)
    grid = (pl.cdiv(R, block_r), pl.cdiv(L, block_l))

    # Explicit VMEM budget: double-buffered x + out blocks plus the starts tile
    # (its single int32 lane pads to 128 lanes in VMEM), with headroom.
    x_block_bytes = block_r * block_l * itemsize
    starts_block_bytes = block_r * 128 * 4
    vmem_limit = int(2 * (2 * x_block_bytes + starts_block_bytes) + (4 << 20))

    kernel = functools.partial(_time_mask_kernel, mask_len=mask_len, seq_len=L)

    out_flat = pl.pallas_call(
        kernel,
        out_shape=jax.ShapeDtypeStruct((R, L), x.dtype),
        grid_spec=pltpu.PrefetchScalarGridSpec(
            num_scalar_prefetch=0,
            grid=grid,
            in_specs=[
                pl.BlockSpec((block_r, block_l), lambda r, l: (r, l)),
                # Row axis is grid axis 0 (outermost): this tile stays constant
                # across the inner lane loop and is not re-DMA'd per lane step.
                pl.BlockSpec((block_r, 1), lambda r, l: (r, 0)),
            ],
            out_specs=pl.BlockSpec((block_r, block_l), lambda r, l: (r, l)),
        ),
        compiler_params=pltpu.CompilerParams(
            dimension_semantics=("parallel", "parallel"),
            vmem_limit_bytes=vmem_limit,
        ),
        cost_estimate=pl.CostEstimate(
            flops=0,
            transcendentals=0,
            bytes_accessed=2 * R * L * itemsize + R * 4,
        ),
    )(x_flat, starts2)

    return out_flat.reshape(N, C, L)


def _reference(x, starts, p):
    # Pure-JAX reference mirroring the torch loop semantics (circular window).
    N, C, L = x.shape
    mask_len = int(L * p)
    pos = jnp.arange(L, dtype=jnp.int32)[None, None, :]
    st = jnp.mod(starts.astype(jnp.int32), L)[:, :, None]
    dist = jnp.mod(pos - st, L)
    return jnp.where(dist >= mask_len, x, jnp.zeros_like(x))


if __name__ == "__main__":
    key = jax.random.PRNGKey(0)

    # (N, C, L, p, target_block_bytes) — the later configs deliberately force
    # tiny byte budgets to exercise partial row / lane tiles of the cdiv grid.
    configs = [
        (2, 4, 16, 0.25, 2 << 20),   # default tiling, single block
        (3, 4, 384, 0.30, 4096),     # >=2 row blocks + partial row edge tile
        (2, 5, 300, 0.50, 512),      # partial row AND partial lane edge tiles
    ]
    for i, (N, C, L, p, tb) in enumerate(configs):
        kx, ks, key = jax.random.split(key, 3)
        x = jax.random.normal(kx, (N, C, L), dtype=jnp.float32)
        starts = jax.random.randint(ks, (N, C), 0, L, dtype=jnp.int32)

        out = jax.block_until_ready(
            random_time_mask(x, starts, p, target_block_bytes=tb))
        ref = _reference(x, starts, p)

        assert out.shape == (N, C, L)
        assert jnp.array_equal(out, ref), f"Pallas kernel mismatch in config {i}"

    print("KERNEL_OK")
</pallas_src>

<mosaic_0001>
module attributes {stable_mosaic.version = 11 : i64} {
  func.func @_time_mask_kernel(%arg0: i32, %arg1: i32, %arg2: memref<8x16xf32, #tpu.memory_space<vmem>>, %arg3: memref<8x1xi32, #tpu.memory_space<vmem>>, %arg4: memref<8x16xf32, #tpu.memory_space<vmem>>) attributes {dimension_semantics = [#tpu.dimension_semantics<parallel>, #tpu.dimension_semantics<parallel>], iteration_bounds = array<i64: 1, 1>, scalar_prefetch = 0 : i64, scratch_operands = 0 : i64, tpu.core_type = #tpu.core_type<tc>, window_params = [{transform_indices = @transform_0, window_bounds = array<i64: 8, 16>}, {transform_indices = @transform_1, window_bounds = array<i64: 8, 1>}, {transform_indices = @transform_2, window_bounds = array<i64: 8, 16>}]} {
    %c16_i32 = arith.constant 16 : i32
    %0 = arith.muli %arg1, %c16_i32 : i32
    %1 = tpu.iota {dimensions = array<i32: 1>} : vector<1x16xi32>
    %2 = vector.broadcast %0 : i32 to vector<1x16xi32>
    %3 = arith.addi %2, %1 : vector<1x16xi32>
    %c0 = arith.constant 0 : index
    %c0_0 = arith.constant 0 : index
    %4 = vector.load %arg3[%c0, %c0_0] : memref<8x1xi32, #tpu.memory_space<vmem>>, vector<8x1xi32>
    %5 = vector.broadcast %3 : vector<1x16xi32> to vector<8x16xi32>
    %6 = vector.broadcast %4 : vector<8x1xi32> to vector<8x16xi32>
    %7 = arith.subi %5, %6 : vector<8x16xi32>
    %c0_i32 = arith.constant 0 : i32
    %8 = vector.broadcast %c0_i32 : i32 to vector<8x16xi32>
    %9 = arith.cmpi slt, %7, %8 : vector<8x16xi32>
    %c16_i32_1 = arith.constant 16 : i32
    %10 = vector.broadcast %c16_i32_1 : i32 to vector<8x16xi32>
    %11 = arith.addi %7, %10 : vector<8x16xi32>
    %12 = arith.select %9, %11, %7 : vector<8x16xi1>, vector<8x16xi32>
    %c4_i32 = arith.constant 4 : i32
    %13 = vector.broadcast %c4_i32 : i32 to vector<8x16xi32>
    %14 = arith.cmpi sge, %12, %13 : vector<8x16xi32>
    %c0_2 = arith.constant 0 : index
    %c0_3 = arith.constant 0 : index
    %15 = vector.load %arg2[%c0_2, %c0_3] : memref<8x16xf32, #tpu.memory_space<vmem>>, vector<8x16xf32>
    %cst = arith.constant 0.000000e+00 : f32
    %16 = vector.broadcast %cst : f32 to vector<8x16xf32>
    %17 = arith.select %14, %15, %16 : vector<8x16xi1>, vector<8x16xf32>
    %c0_4 = arith.constant 0 : index
    %c0_5 = arith.constant 0 : index
    %18 = vector.load %arg4[%c0_4, %c0_5] : memref<8x16xf32, #tpu.memory_space<vmem>>, vector<8x16xf32>
    tpu.vector_store %arg4[%c0_4, %c0_5], %17 {strides = array<i32>} : memref<8x16xf32, #tpu.memory_space<vmem>>, vector<8x16xf32>,
    return
  }
  func.func @transform_0(%arg0: i32, %arg1: i32) -> (i32, i32) {
    %c0_i32 = arith.constant 0 : i32
    return %arg0, %arg1 : i32, i32
  }
  func.func @transform_1(%arg0: i32, %arg1: i32) -> (i32, i32) {
    %c0_i32 = arith.constant 0 : i32
    %c0_i32_0 = arith.constant 0 : i32
    return %arg0, %c0_i32 : i32, i32
  }
  func.func @transform_2(%arg0: i32, %arg1: i32) -> (i32, i32) {
    %c0_i32 = arith.constant 0 : i32
    return %arg0, %arg1 : i32, i32
  }
}

</mosaic_0001>

<llo_original>
// kernel: tpu_custom_call.1
$region0: #{tpu_custom_call.1}
  #allocation0 [shape = 'u32[]', space=smem, size = 0x4, offset = 0x4, fixed_abs, tag = 'smem constant byte address 0x4 - core index']
  #allocation1 [shape = 'u32[72,128]{1,0:T(1,128)}', space=vmem, size = 0x9000, scoped, tag = 'internal scratch']
  %s0 = inlined_call_operand.vmem [shape: f32[8,16], index: 0, kind: input, shape index: {}]
  %s1 = inlined_call_operand.vmem [shape: s32[8,1], index: 1, kind: input, shape index: {}]
  %s2 = inlined_call_operand.hbm [shape: f32[8,16], index: 2, kind: output, shape index: {}]
  %s3 = sld [smem:[#allocation0]]
  $region18: #{tpu_custom_call.1} parent=0
    _
  %s5 = ssub.s32 1, %s3
  %s6 = scalar_select 0, %s5, %s3
  $region1: #{tpu_custom_call.1} parent=0
    #allocation2 [shape = 'u8[4096]{0}', space=vmem, size = 0x1000, scoped, tag = 'output window, operand 0, single buffered']
    #allocation3 [shape = 's32[1]{0}', space=sflag, size = 0x4, scoped, tag = 'scoped memory for tpu_custom_call.1']
    %7 = vsyncpa [#allocation3], 0
    // Predicated region
    $region2: #{tpu_custom_call.1} parent=1 // pred_check
      _
    $region3: #{tpu_custom_call.1} parent=1 // pred_check_branch
      %9 = sbr.rel (0) target = $region5
    $region4: #{tpu_custom_call.1} parent=1 // pred_region
      _
    $region5: #{tpu_custom_call.1} parent=1 // pred_fallthru
      _
    // Predicated region
    $region6: #{tpu_custom_call.1} parent=1 // pred_check
      _
    $region7: #{tpu_custom_call.1} parent=1 // pred_check_branch
      %11 = sbr.rel (0) target = $region9
    $region8: #{tpu_custom_call.1} parent=1 // pred_region
      _
    $region9: #{tpu_custom_call.1} parent=1 // pred_fallthru
      _
    %s12 = smul.u32 0, 16
    %v13 = vlaneseq
    %v14 = vand.u32 %v13, 127
    %v15 = vstv %s12
    %v16 = vadd.s32 %v15, %v14
    %v17 = vld [vmem:[%s1] sm:$0xff]
    %18 = vset.pattern.permute.xlu0 0
    %19 = vperm.xlu0 %18, %v17
    %v20 = vpop.permute.xlu0 %19
    %v21 = vsub.s32 %v16, %v20
    %vm22 = vcmp.lt.s32.totalorder %v21, 0
    %v23 = vadd.s32 %v21, 16
    %v24 = vsel %vm22, %v23, %v21
    %vm25 = vcmp.ge.s32.totalorder %v24, 4
    %v26 = vld [vmem:[%s0] sm:$0xff]
    %v27 = vsel %vm25, %v26, 0.0
    %vm28 = vcmask 130048
    %29 = vst.msk [vmem:[#allocation2] sm:$0xff] %vm28, %v27
    // Predicated region
    $region10: #{tpu_custom_call.1} parent=1 // pred_check
      _
    $region11: #{tpu_custom_call.1} parent=1 // pred_check_branch
      %31 = sbr.rel (0) target = $region13
    $region12: #{tpu_custom_call.1} parent=1 // pred_region
      %33 = vsyncadd [#allocation3], 0
      %s35 = sshll.u32 [#allocation2], 4
      %s36 = int_to_ptr.vmem [resolvable:$true] %s35
      %s37 = sshll.u32 %s2, 4
      %s38 = int_to_ptr.hbm [resolvable:$true] %s37
      %40 = dma.vmem_to_hbm [thread:$0]  %s36, 128, %s38, [#allocation3]
    $region13: #{tpu_custom_call.1} parent=1 // pred_fallthru
      _
    // Predicated region
    $region14: #{tpu_custom_call.1} parent=1 // pred_check
      _
    $region15: #{tpu_custom_call.1} parent=1 // pred_check_branch
      %42 = sbr.rel (0) target = $region17
    $region16: #{tpu_custom_call.1} parent=1 // pred_region
      %44 = dma.done [#allocation3], 128
    $region17: #{tpu_custom_call.1} parent=1 // pred_fallthru
      _
    %45 = vsyncpa [#allocation3], 1

</llo_original>
